<compile_context>
chip_gen: v7x
topology: tpu7x:2x2x1
jax: 0.10.0
libtpu: 0.0.40
codegen_flags: <defaults>
</compile_context>

<pallas_src>
import math

import jax
import jax.numpy as jnp
from jax.experimental import pallas as pl
from jax.experimental.pallas import tpu as pltpu


_LANE_CHOICES = (512, 256, 128)       # lane-dense last dims (multiples of 128)
_MIN_BLOCK_ELEMS = 128 * 1024         # 512 KiB f32 lower bound per block
_MAX_BLOCK_ELEMS = 2 * 1024 * 1024    # 8 MiB f32 upper bound per block


def _cdiv(a, b):
    return -(-a // b)


def _round_up(a, b):
    return _cdiv(a, b) * b


def _vmem_limit_bytes():
    """Generation-aware scoped-VMEM limit (conservative fallback: 64 MiB)."""
    cap = 64 * 1024 * 1024                      # v7x per-TC physical VMEM
    try:
        info = pltpu.get_tpu_info()
        cap_attr = getattr(info, "vmem_capacity_bytes", None)
        if cap_attr:
            cap = int(cap_attr)
    except Exception:
        pass
    # Leave 25% headroom for Mosaic internal scratch / metadata.
    return (3 * cap) // 4


def _target_block_elems(n_arrays, vmem_limit):
    """Per-input-array block elems: half the limit goes to double-buffered blocks."""
    budget = vmem_limit // 2                    # rest: temporaries + accumulators
    per_array = budget // max(1, 2 * n_arrays)  # 2x = double buffering
    elems = per_array // 4                      # size as if f32 (worst case)
    return int(min(max(elems, _MIN_BLOCK_ELEMS), _MAX_BLOCK_ELEMS))


def _prep(x, pad_value):
    """Reshape (copy-free in the common case) to a lane-dense (rows, LW) slab."""
    flat = x.reshape(-1)
    n = flat.shape[0]
    lw = None
    for cand in _LANE_CHOICES:
        if n % cand == 0:
            lw = cand
            break
    if lw is None:
        # Rare fallback (numel not a multiple of 128): pad with a reduction-
        # neutral value (<128 extra elems, but the concat rewrites the tensor).
        # TODO(synk): a fully copy-free tail would need a manual-DMA path on
        # the flat HBM ref (memory_space=pl.ANY) with lane-level masking.
        lw = 128
        n_pad = (-n) % lw
        flat = jnp.concatenate(
            [flat, jnp.full((n_pad,), pad_value, dtype=flat.dtype)]
        )
        n += n_pad
    rows = n // lw
    return flat.reshape(rows, lw), rows, lw


def _pick_block_rows(rows_total, lw, target_elems):
    """Block rows: multiple of 8, ~target_elems per block, capped for tiny slabs."""
    target_rows = max(8, (target_elems // lw) // 8 * 8)
    rows_cap = _cdiv(rows_total, 8) * 8
    return max(8, min(target_rows, rows_cap))


# ---------------------------------------------------------------------------
# Fused reduction kernel: all streams share one 1-D grid; per-stream VMEM
# accumulators; scalar SMEM outputs written on the final grid step.
# ---------------------------------------------------------------------------
def _emit_stream(step, kind, refs, acc_ref, *, rows, br, lw, acc_rows,
                 needs_mask):
    """Accumulate one stream's per-step contribution into its VMEM scratch."""

    def value(row_mask):
        if kind == "log":
            x = refs[0][...].astype(jnp.float32)
            if row_mask is not None:
                x = jnp.where(row_mask, x, 1.0)          # mask BEFORE log
            return jnp.log(x)
        # SSE: subtract AFTER the f32 cast (avoid bf16 cancellation).
        d = refs[0][...].astype(jnp.float32) - refs[1][...].astype(jnp.float32)
        sq = d * d
        if row_mask is not None:
            sq = jnp.where(row_mask, sq, 0.0)            # mask AFTER square
        return sq

    def accumulate(val):
        if br == acc_rows:
            acc_ref[...] += val
        else:
            # Row-regrouping reshape (sublane-major split) stays layout-free;
            # several acc_rows-wide partials keep independent add chains.
            acc_ref[...] += jnp.sum(
                val.reshape(br // acc_rows, acc_rows, lw), axis=0)

    def fast_path():
        accumulate(value(None))

    if not needs_mask:
        fast_path()
        return

    # Unclamped block start: ragged tails AND fully-out-of-range steps (whose
    # DMA index was clamped) both land in the masked branch -> neutral values.
    row0 = step * br

    def masked_path():
        ridx = jax.lax.broadcasted_iota(jnp.int32, (br, lw), 0) + row0
        accumulate(value(ridx < rows))

    pl.when(row0 + br <= rows)(fast_path)
    pl.when(row0 + br > rows)(masked_path)


def _make_fused_kernel(metas, n_arrays):
    def kernel(*refs):
        in_refs = refs[:n_arrays]
        out_ref = refs[n_arrays]
        acc_refs = refs[n_arrays + 1:]

        step = pl.program_id(0)

        @pl.when(step == 0)
        def _init():
            for acc in acc_refs:
                acc[...] = jnp.zeros_like(acc)

        pos = 0
        for s_idx, m in enumerate(metas):
            n_in = 2 if m["kind"] == "sse" else 1
            _emit_stream(step, m["kind"], in_refs[pos:pos + n_in],
                         acc_refs[s_idx], rows=m["rows"], br=m["br"],
                         lw=m["lw"], acc_rows=m["acc_rows"],
                         needs_mask=m["needs_mask"])
            pos += n_in

        @pl.when(step == pl.num_programs(0) - 1)
        def _finish():
            for s_idx in range(len(metas)):
                out_ref[s_idx] = jnp.sum(acc_refs[s_idx][...])

    return kernel


def _make_index_map(real_blocks):
    last = real_blocks - 1

    def index_map(step):
        if last == 0:
            return (0, 0)
        return (jnp.minimum(step, last), 0)   # keep the DMA in bounds

    return index_map


def fused_rd_reductions(log_slabs, sse_pair):
    """One pallas_call computing sum(log(.)) per log slab plus one SSE.

    log_slabs: list of (slab2d, rows, lw)
    sse_pair:  None or ((a2d, b2d), rows, lw)
    Returns an f32 vector [log_sum_0, ..., log_sum_{K-1}, (sse)].
    """
    metas = []
    for slab, rows, lw in log_slabs:
        metas.append(dict(kind="log", arrs=[slab], rows=rows, lw=lw))
    if sse_pair is not None:
        (a, b), rows, lw = sse_pair
        metas.append(dict(kind="sse", arrs=[a, b], rows=rows, lw=lw))
    if not metas:
        return jnp.zeros((0,), jnp.float32)

    n_arrays = sum(len(m["arrs"]) for m in metas)
    vmem_limit = _vmem_limit_bytes()
    target_elems = _target_block_elems(n_arrays, vmem_limit)

    # Grid steps are driven by the stream needing the most blocks; every other
    # stream spreads its rows over the same steps so each byte is DMA'd once.
    steps = 1
    for m in metas:
        br_nat = _pick_block_rows(m["rows"], m["lw"], target_elems)
        steps = max(steps, _cdiv(m["rows"], br_nat))

    arrays = []
    in_specs = []
    scratch = []
    for m in metas:
        br = max(8, _round_up(_cdiv(m["rows"], steps), 8))
        m["br"] = br
        m["real_blocks"] = max(1, _cdiv(m["rows"], br))
        m["needs_mask"] = steps * br > m["rows"]
        m["acc_rows"] = 32 if br % 32 == 0 else 8
        idx_map = _make_index_map(m["real_blocks"])
        for arr in m["arrs"]:
            arrays.append(arr)
            in_specs.append(pl.BlockSpec((br, m["lw"]), idx_map))
        scratch.append(pltpu.VMEM((m["acc_rows"], m["lw"]), jnp.float32))

    kernel = _make_fused_kernel(metas, n_arrays)
    return pl.pallas_call(
        kernel,
        out_shape=jax.ShapeDtypeStruct((len(metas),), jnp.float32),
        grid=(steps,),
        in_specs=in_specs,
        out_specs=pl.BlockSpec(memory_space=pltpu.MemorySpace.SMEM),
        scratch_shapes=scratch,
        compiler_params=pltpu.CompilerParams(
            dimension_semantics=("arbitrary",),
            vmem_limit_bytes=vmem_limit,
        ),
    )(*arrays)


# ---------------------------------------------------------------------------
# RateDistortionLoss forward (matches the PyTorch module's semantics).
# ---------------------------------------------------------------------------
def rate_distortion_loss(output, target, lmbda=0.01, metric="mse"):
    N, _, H, W = target.shape
    num_pixels = N * H * W
    out = {}

    log_slabs = [_prep(lik, 1.0) for lik in output["likelihoods"].values()]
    n_log = len(log_slabs)

    if metric == "mse":
        x_hat = output["x_hat"]
        a2d, rows, lw = _prep(x_hat, 0.0)
        b2d, _, _ = _prep(target, 0.0)
        sse_pair = ((a2d, b2d), rows, lw)
    elif metric == "ms-ssim":
        # TODO(synk): ms-ssim metric not implemented (external ms_ssim
        # dependency in the reference; needs a multi-scale conv pipeline).
        raise NotImplementedError("ms-ssim metric not implemented")
    else:
        raise ValueError(f"unknown metric: {metric}")

    scalars = fused_rd_reductions(log_slabs, sse_pair)

    if n_log:
        out["rate_loss"] = jnp.sum(scalars[:n_log]) * jnp.float32(
            1.0 / (-math.log(2) * num_pixels))
    else:
        out["rate_loss"] = jnp.float32(0.0)

    # nn.MSELoss() averages over ALL elements (N*C*H*W).
    mse = scalars[n_log] / jnp.float32(output["x_hat"].size)
    out["distortion_loss"] = (255.0 ** 2) * mse
    out["loss"] = lmbda * out["distortion_loss"] + out["rate_loss"]
    return out


# ---------------------------------------------------------------------------
# Demo / self-check
# ---------------------------------------------------------------------------
if __name__ == "__main__":
    key = jax.random.PRNGKey(0)
    k_t, k_n, k_y, k_z = jax.random.split(key, 4)

    # Small shapes consistent with the forward pass (images in NCHW).
    N, C, H, W = 2, 4, 16, 16
    target = jax.random.uniform(k_t, (N, C, H, W), dtype=jnp.float32)
    x_hat = jnp.clip(
        target + 0.05 * jax.random.normal(k_n, (N, C, H, W), dtype=jnp.float32),
        0.0,
        1.0,
    )
    # Likelihoods are probabilities in (0, 1]; two entries like CompressAI ('y','z').
    lik_y = jax.random.uniform(
        k_y, (N, 8, 8, 8), dtype=jnp.float32, minval=1e-3, maxval=1.0
    )
    lik_z = jax.random.uniform(
        k_z, (N, 8, 4, 4), dtype=jnp.float32, minval=1e-3, maxval=1.0
    )

    output = {"x_hat": x_hat, "likelihoods": {"y": lik_y, "z": lik_z}}

    res = rate_distortion_loss(output, target, lmbda=0.01, metric="mse")
    res = jax.tree_util.tree_map(jax.block_until_ready, res)

    # Pure-JAX reference for correctness.
    num_pixels = N * H * W
    ref_rate = sum(
        jnp.sum(jnp.log(l)) / (-math.log(2) * num_pixels)
        for l in (lik_y, lik_z)
    )
    ref_dist = (255.0 ** 2) * jnp.mean((x_hat - target) ** 2)
    ref_loss = 0.01 * ref_dist + ref_rate

    assert jnp.allclose(res["rate_loss"], ref_rate, rtol=1e-5, atol=1e-5)
    assert jnp.allclose(res["distortion_loss"], ref_dist, rtol=1e-5, atol=1e-5)
    assert jnp.allclose(res["loss"], ref_loss, rtol=1e-5, atol=1e-5)

    print("KERNEL_OK")
</pallas_src>

<mosaic_0001>
module attributes {stable_mosaic.version = 11 : i64} {
  func.func @kernel(%arg0: i32, %arg1: memref<8x512xf32, #tpu.memory_space<vmem>>, %arg2: memref<8x256xf32, #tpu.memory_space<vmem>>, %arg3: memref<8x512xf32, #tpu.memory_space<vmem>>, %arg4: memref<8x512xf32, #tpu.memory_space<vmem>>, %arg5: memref<3xf32, #tpu.memory_space<smem>>, %arg6: memref<8x512xf32, #tpu.memory_space<vmem>>, %arg7: memref<8x256xf32, #tpu.memory_space<vmem>>, %arg8: memref<8x512xf32, #tpu.memory_space<vmem>>) attributes {dimension_semantics = [#tpu.dimension_semantics<arbitrary>], iteration_bounds = array<i64: 1>, scalar_prefetch = 0 : i64, scratch_operands = 3 : i64, tpu.core_type = #tpu.core_type<tc>, window_params = [{transform_indices = @transform_0, window_bounds = array<i64: 8, 512>}, {transform_indices = @transform_1, window_bounds = array<i64: 8, 256>}, {transform_indices = @transform_2, window_bounds = array<i64: 8, 512>}, {transform_indices = @transform_3, window_bounds = array<i64: 8, 512>}, {transform_indices = @transform_4, window_bounds = array<i64: 3>}]} {
    %c0_i32 = arith.constant 0 : i32
    %0 = arith.cmpi eq, %arg0, %c0_i32 : i32
    %1 = arith.extui %0 : i1 to i32
    %c0_i32_0 = arith.constant 0 : i32
    %2 = arith.cmpi ne, %1, %c0_i32_0 : i32
    scf.if %2 {
      %cst = arith.constant 0.000000e+00 : f32
      %33 = vector.broadcast %cst : f32 to vector<8x512xf32>
      %c0 = arith.constant 0 : index
      %c0_20 = arith.constant 0 : index
      %34 = vector.load %arg6[%c0, %c0_20] : memref<8x512xf32, #tpu.memory_space<vmem>>, vector<8x512xf32>
      tpu.vector_store %arg6[%c0, %c0_20], %33 {strides = array<i32>} : memref<8x512xf32, #tpu.memory_space<vmem>>, vector<8x512xf32>,
      %cst_21 = arith.constant 0.000000e+00 : f32
      %35 = vector.broadcast %cst_21 : f32 to vector<8x256xf32>
      %c0_22 = arith.constant 0 : index
      %c0_23 = arith.constant 0 : index
      %36 = vector.load %arg7[%c0_22, %c0_23] : memref<8x256xf32, #tpu.memory_space<vmem>>, vector<8x256xf32>
      tpu.vector_store %arg7[%c0_22, %c0_23], %35 {strides = array<i32>} : memref<8x256xf32, #tpu.memory_space<vmem>>, vector<8x256xf32>,
      %cst_24 = arith.constant 0.000000e+00 : f32
      %37 = vector.broadcast %cst_24 : f32 to vector<8x512xf32>
      %c0_25 = arith.constant 0 : index
      %c0_26 = arith.constant 0 : index
      %38 = vector.load %arg8[%c0_25, %c0_26] : memref<8x512xf32, #tpu.memory_space<vmem>>, vector<8x512xf32>
      tpu.vector_store %arg8[%c0_25, %c0_26], %37 {strides = array<i32>} : memref<8x512xf32, #tpu.memory_space<vmem>>, vector<8x512xf32>,
    } else {
    }
    %c8_i32 = arith.constant 8 : i32
    %3 = arith.muli %arg0, %c8_i32 : i32
    %c8_i32_1 = arith.constant 8 : i32
    %4 = arith.addi %3, %c8_i32_1 : i32
    %c2_i32 = arith.constant 2 : i32
    %5 = arith.cmpi sle, %4, %c2_i32 : i32
    %6 = arith.extui %5 : i1 to i32
    %c0_i32_2 = arith.constant 0 : i32
    %7 = arith.cmpi ne, %6, %c0_i32_2 : i32
    scf.if %7 {
      %c0 = arith.constant 0 : index
      %c0_20 = arith.constant 0 : index
      %33 = vector.load %arg1[%c0, %c0_20] : memref<8x512xf32, #tpu.memory_space<vmem>>, vector<8x512xf32>
      %34 = math.log %33 : vector<8x512xf32>
      %c0_21 = arith.constant 0 : index
      %c0_22 = arith.constant 0 : index
      %35 = vector.load %arg6[%c0_21, %c0_22] : memref<8x512xf32, #tpu.memory_space<vmem>>, vector<8x512xf32>
      %36 = arith.addf %35, %34 : vector<8x512xf32>
      %c0_23 = arith.constant 0 : index
      %c0_24 = arith.constant 0 : index
      %37 = vector.load %arg6[%c0_23, %c0_24] : memref<8x512xf32, #tpu.memory_space<vmem>>, vector<8x512xf32>
      tpu.vector_store %arg6[%c0_23, %c0_24], %36 {strides = array<i32>} : memref<8x512xf32, #tpu.memory_space<vmem>>, vector<8x512xf32>,
    } else {
    }
    %c8_i32_3 = arith.constant 8 : i32
    %8 = arith.addi %3, %c8_i32_3 : i32
    %c2_i32_4 = arith.constant 2 : i32
    %9 = arith.cmpi sgt, %8, %c2_i32_4 : i32
    %10 = arith.extui %9 : i1 to i32
    %c0_i32_5 = arith.constant 0 : i32
    %11 = arith.cmpi ne, %10, %c0_i32_5 : i32
    scf.if %11 {
      %33 = tpu.iota {dimensions = array<i32: 0>} : vector<8x512xi32>
      %34 = vector.broadcast %3 : i32 to vector<8x512xi32>
      %35 = arith.addi %33, %34 : vector<8x512xi32>
      %c2_i32_20 = arith.constant 2 : i32
      %36 = vector.broadcast %c2_i32_20 : i32 to vector<8x512xi32>
      %37 = arith.cmpi slt, %35, %36 : vector<8x512xi32>
      %c0 = arith.constant 0 : index
      %c0_21 = arith.constant 0 : index
      %38 = vector.load %arg1[%c0, %c0_21] : memref<8x512xf32, #tpu.memory_space<vmem>>, vector<8x512xf32>
      %cst = arith.constant 1.000000e+00 : f32
      %39 = vector.broadcast %cst : f32 to vector<8x512xf32>
      %40 = arith.select %37, %38, %39 : vector<8x512xi1>, vector<8x512xf32>
      %41 = math.log %40 : vector<8x512xf32>
      %c0_22 = arith.constant 0 : index
      %c0_23 = arith.constant 0 : index
      %42 = vector.load %arg6[%c0_22, %c0_23] : memref<8x512xf32, #tpu.memory_space<vmem>>, vector<8x512xf32>
      %43 = arith.addf %42, %41 : vector<8x512xf32>
      %c0_24 = arith.constant 0 : index
      %c0_25 = arith.constant 0 : index
      %44 = vector.load %arg6[%c0_24, %c0_25] : memref<8x512xf32, #tpu.memory_space<vmem>>, vector<8x512xf32>
      tpu.vector_store %arg6[%c0_24, %c0_25], %43 {strides = array<i32>} : memref<8x512xf32, #tpu.memory_space<vmem>>, vector<8x512xf32>,
    } else {
    }
    %c8_i32_6 = arith.constant 8 : i32
    %12 = arith.muli %arg0, %c8_i32_6 : i32
    %c8_i32_7 = arith.constant 8 : i32
    %13 = arith.addi %12, %c8_i32_7 : i32
    %c1_i32 = arith.constant 1 : i32
    %14 = arith.cmpi sle, %13, %c1_i32 : i32
    %15 = arith.extui %14 : i1 to i32
    %c0_i32_8 = arith.constant 0 : i32
    %16 = arith.cmpi ne, %15, %c0_i32_8 : i32
    scf.if %16 {
      %c0 = arith.constant 0 : index
      %c0_20 = arith.constant 0 : index
      %33 = vector.load %arg2[%c0, %c0_20] : memref<8x256xf32, #tpu.memory_space<vmem>>, vector<8x256xf32>
      %34 = math.log %33 : vector<8x256xf32>
      %c0_21 = arith.constant 0 : index
      %c0_22 = arith.constant 0 : index
      %35 = vector.load %arg7[%c0_21, %c0_22] : memref<8x256xf32, #tpu.memory_space<vmem>>, vector<8x256xf32>
      %36 = arith.addf %35, %34 : vector<8x256xf32>
      %c0_23 = arith.constant 0 : index
      %c0_24 = arith.constant 0 : index
      %37 = vector.load %arg7[%c0_23, %c0_24] : memref<8x256xf32, #tpu.memory_space<vmem>>, vector<8x256xf32>
      tpu.vector_store %arg7[%c0_23, %c0_24], %36 {strides = array<i32>} : memref<8x256xf32, #tpu.memory_space<vmem>>, vector<8x256xf32>,
    } else {
    }
    %c8_i32_9 = arith.constant 8 : i32
    %17 = arith.addi %12, %c8_i32_9 : i32
    %c1_i32_10 = arith.constant 1 : i32
    %18 = arith.cmpi sgt, %17, %c1_i32_10 : i32
    %19 = arith.extui %18 : i1 to i32
    %c0_i32_11 = arith.constant 0 : i32
    %20 = arith.cmpi ne, %19, %c0_i32_11 : i32
    scf.if %20 {
      %33 = tpu.iota {dimensions = array<i32: 0>} : vector<8x256xi32>
      %34 = vector.broadcast %12 : i32 to vector<8x256xi32>
      %35 = arith.addi %33, %34 : vector<8x256xi32>
      %c1_i32_20 = arith.constant 1 : i32
      %36 = vector.broadcast %c1_i32_20 : i32 to vector<8x256xi32>
      %37 = arith.cmpi slt, %35, %36 : vector<8x256xi32>
      %c0 = arith.constant 0 : index
      %c0_21 = arith.constant 0 : index
      %38 = vector.load %arg2[%c0, %c0_21] : memref<8x256xf32, #tpu.memory_space<vmem>>, vector<8x256xf32>
      %cst = arith.constant 1.000000e+00 : f32
      %39 = vector.broadcast %cst : f32 to vector<8x256xf32>
      %40 = arith.select %37, %38, %39 : vector<8x256xi1>, vector<8x256xf32>
      %41 = math.log %40 : vector<8x256xf32>
      %c0_22 = arith.constant 0 : index
      %c0_23 = arith.constant 0 : index
      %42 = vector.load %arg7[%c0_22, %c0_23] : memref<8x256xf32, #tpu.memory_space<vmem>>, vector<8x256xf32>
      %43 = arith.addf %42, %41 : vector<8x256xf32>
      %c0_24 = arith.constant 0 : index
      %c0_25 = arith.constant 0 : index
      %44 = vector.load %arg7[%c0_24, %c0_25] : memref<8x256xf32, #tpu.memory_space<vmem>>, vector<8x256xf32>
      tpu.vector_store %arg7[%c0_24, %c0_25], %43 {strides = array<i32>} : memref<8x256xf32, #tpu.memory_space<vmem>>, vector<8x256xf32>,
    } else {
    }
    %c8_i32_12 = arith.constant 8 : i32
    %21 = arith.muli %arg0, %c8_i32_12 : i32
    %c8_i32_13 = arith.constant 8 : i32
    %22 = arith.addi %21, %c8_i32_13 : i32
    %c4_i32 = arith.constant 4 : i32
    %23 = arith.cmpi sle, %22, %c4_i32 : i32
    %24 = arith.extui %23 : i1 to i32
    %c0_i32_14 = arith.constant 0 : i32
    %25 = arith.cmpi ne, %24, %c0_i32_14 : i32
    scf.if %25 {
      %c0 = arith.constant 0 : index
      %c0_20 = arith.constant 0 : index
      %33 = vector.load %arg3[%c0, %c0_20] : memref<8x512xf32, #tpu.memory_space<vmem>>, vector<8x512xf32>
      %c0_21 = arith.constant 0 : index
      %c0_22 = arith.constant 0 : index
      %34 = vector.load %arg4[%c0_21, %c0_22] : memref<8x512xf32, #tpu.memory_space<vmem>>, vector<8x512xf32>
      %35 = arith.subf %33, %34 : vector<8x512xf32>
      %36 = arith.mulf %35, %35 : vector<8x512xf32>
      %c0_23 = arith.constant 0 : index
      %c0_24 = arith.constant 0 : index
      %37 = vector.load %arg8[%c0_23, %c0_24] : memref<8x512xf32, #tpu.memory_space<vmem>>, vector<8x512xf32>
      %38 = arith.addf %37, %36 : vector<8x512xf32>
      %c0_25 = arith.constant 0 : index
      %c0_26 = arith.constant 0 : index
      %39 = vector.load %arg8[%c0_25, %c0_26] : memref<8x512xf32, #tpu.memory_space<vmem>>, vector<8x512xf32>
      tpu.vector_store %arg8[%c0_25, %c0_26], %38 {strides = array<i32>} : memref<8x512xf32, #tpu.memory_space<vmem>>, vector<8x512xf32>,
    } else {
    }
    %c8_i32_15 = arith.constant 8 : i32
    %26 = arith.addi %21, %c8_i32_15 : i32
    %c4_i32_16 = arith.constant 4 : i32
    %27 = arith.cmpi sgt, %26, %c4_i32_16 : i32
    %28 = arith.extui %27 : i1 to i32
    %c0_i32_17 = arith.constant 0 : i32
    %29 = arith.cmpi ne, %28, %c0_i32_17 : i32
    scf.if %29 {
      %33 = tpu.iota {dimensions = array<i32: 0>} : vector<8x512xi32>
      %34 = vector.broadcast %21 : i32 to vector<8x512xi32>
      %35 = arith.addi %33, %34 : vector<8x512xi32>
      %c4_i32_20 = arith.constant 4 : i32
      %36 = vector.broadcast %c4_i32_20 : i32 to vector<8x512xi32>
      %37 = arith.cmpi slt, %35, %36 : vector<8x512xi32>
      %c0 = arith.constant 0 : index
      %c0_21 = arith.constant 0 : index
      %38 = vector.load %arg3[%c0, %c0_21] : memref<8x512xf32, #tpu.memory_space<vmem>>, vector<8x512xf32>
      %c0_22 = arith.constant 0 : index
      %c0_23 = arith.constant 0 : index
      %39 = vector.load %arg4[%c0_22, %c0_23] : memref<8x512xf32, #tpu.memory_space<vmem>>, vector<8x512xf32>
      %40 = arith.subf %38, %39 : vector<8x512xf32>
      %41 = arith.mulf %40, %40 : vector<8x512xf32>
      %cst = arith.constant 0.000000e+00 : f32
      %42 = vector.broadcast %cst : f32 to vector<8x512xf32>
      %43 = arith.select %37, %41, %42 : vector<8x512xi1>, vector<8x512xf32>
      %c0_24 = arith.constant 0 : index
      %c0_25 = arith.constant 0 : index
      %44 = vector.load %arg8[%c0_24, %c0_25] : memref<8x512xf32, #tpu.memory_space<vmem>>, vector<8x512xf32>
      %45 = arith.addf %44, %43 : vector<8x512xf32>
      %c0_26 = arith.constant 0 : index
      %c0_27 = arith.constant 0 : index
      %46 = vector.load %arg8[%c0_26, %c0_27] : memref<8x512xf32, #tpu.memory_space<vmem>>, vector<8x512xf32>
      tpu.vector_store %arg8[%c0_26, %c0_27], %45 {strides = array<i32>} : memref<8x512xf32, #tpu.memory_space<vmem>>, vector<8x512xf32>,
    } else {
    }
    %c0_i32_18 = arith.constant 0 : i32
    %30 = arith.cmpi eq, %arg0, %c0_i32_18 : i32
    %31 = arith.extui %30 : i1 to i32
    %c0_i32_19 = arith.constant 0 : i32
    %32 = arith.cmpi ne, %31, %c0_i32_19 : i32
    scf.if %32 {
      %c0 = arith.constant 0 : index
      %c0_20 = arith.constant 0 : index
      %33 = vector.load %arg6[%c0, %c0_20] : memref<8x512xf32, #tpu.memory_space<vmem>>, vector<8x512xf32>
      %34 = vector.shape_cast %33 : vector<8x512xf32> to vector<1x8x512xf32>
      %cst = arith.constant dense<0.000000e+00> : vector<1xf32>
      %35 = vector.multi_reduction <add>, %34, %cst [1, 2] : vector<1x8x512xf32> to vector<1xf32>
      %36 = vector.shape_cast %35 : vector<1xf32> to vector<1x1x1xf32>
      %37 = vector.extract %36[0, 0, 0] : f32 from vector<1x1x1xf32>
      %c0_21 = arith.constant 0 : index
      %38 = memref.load %arg5[%c0_21] : memref<3xf32, #tpu.memory_space<smem>>
      memref.store %37, %arg5[%c0_21] : memref<3xf32, #tpu.memory_space<smem>>
      %c0_22 = arith.constant 0 : index
      %c0_23 = arith.constant 0 : index
      %39 = vector.load %arg7[%c0_22, %c0_23] : memref<8x256xf32, #tpu.memory_space<vmem>>, vector<8x256xf32>
      %40 = vector.shape_cast %39 : vector<8x256xf32> to vector<1x8x256xf32>
      %cst_24 = arith.constant dense<0.000000e+00> : vector<1xf32>
      %41 = vector.multi_reduction <add>, %40, %cst_24 [1, 2] : vector<1x8x256xf32> to vector<1xf32>
      %42 = vector.shape_cast %41 : vector<1xf32> to vector<1x1x1xf32>
      %43 = vector.extract %42[0, 0, 0] : f32 from vector<1x1x1xf32>
      %c1 = arith.constant 1 : index
      %44 = memref.load %arg5[%c1] : memref<3xf32, #tpu.memory_space<smem>>
      memref.store %43, %arg5[%c1] : memref<3xf32, #tpu.memory_space<smem>>
      %c0_25 = arith.constant 0 : index
      %c0_26 = arith.constant 0 : index
      %45 = vector.load %arg8[%c0_25, %c0_26] : memref<8x512xf32, #tpu.memory_space<vmem>>, vector<8x512xf32>
      %46 = vector.shape_cast %45 : vector<8x512xf32> to vector<1x8x512xf32>
      %cst_27 = arith.constant dense<0.000000e+00> : vector<1xf32>
      %47 = vector.multi_reduction <add>, %46, %cst_27 [1, 2] : vector<1x8x512xf32> to vector<1xf32>
      %48 = vector.shape_cast %47 : vector<1xf32> to vector<1x1x1xf32>
      %49 = vector.extract %48[0, 0, 0] : f32 from vector<1x1x1xf32>
      %c2 = arith.constant 2 : index
      %50 = memref.load %arg5[%c2] : memref<3xf32, #tpu.memory_space<smem>>
      memref.store %49, %arg5[%c2] : memref<3xf32, #tpu.memory_space<smem>>
    } else {
    }
    return
  }
  func.func @transform_0(%arg0: i32) -> (i32, i32) {
    %c0_i32 = arith.constant 0 : i32
    %c0_i32_0 = arith.constant 0 : i32
    %c0_i32_1 = arith.constant 0 : i32
    return %c0_i32, %c0_i32_0 : i32, i32
  }
  func.func @transform_1(%arg0: i32) -> (i32, i32) {
    %c0_i32 = arith.constant 0 : i32
    %c0_i32_0 = arith.constant 0 : i32
    %c0_i32_1 = arith.constant 0 : i32
    return %c0_i32, %c0_i32_0 : i32, i32
  }
  func.func @transform_2(%arg0: i32) -> (i32, i32) {
    %c0_i32 = arith.constant 0 : i32
    %c0_i32_0 = arith.constant 0 : i32
    %c0_i32_1 = arith.constant 0 : i32
    return %c0_i32, %c0_i32_0 : i32, i32
  }
  func.func @transform_3(%arg0: i32) -> (i32, i32) {
    %c0_i32 = arith.constant 0 : i32
    %c0_i32_0 = arith.constant 0 : i32
    %c0_i32_1 = arith.constant 0 : i32
    return %c0_i32, %c0_i32_0 : i32, i32
  }
  func.func @transform_4(%arg0: i32) -> i32 {
    %c0_i32 = arith.constant 0 : i32
    %c0_i32_0 = arith.constant 0 : i32
    return %c0_i32 : i32
  }
}

</mosaic_0001>

<llo_original>
// kernel: tpu_custom_call.1
$region0: #{tpu_custom_call.1}
  #allocation0 [shape = 'u32[]', space=smem, size = 0x4, offset = 0x4, fixed_abs, tag = 'smem constant byte address 0x4 - core index']
  #allocation1 [shape = 'u32[144,128]{1,0:T(1,128)}', space=vmem, size = 0x12000, scoped, tag = 'internal scratch']
  #allocation2 [shape = 'f32[8,512]{1,0:T(8,128)}', space=vmem, size = 0x4000, scoped, tag = 'scratch operand']
  #allocation3 [shape = 'f32[8,256]{1,0:T(8,128)}', space=vmem, size = 0x2000, scoped, tag = 'scratch operand']
  #allocation4 [shape = 'f32[8,512]{1,0:T(8,128)}', space=vmem, size = 0x4000, scoped, tag = 'scratch operand']
  %s0 = inlined_call_operand.hbm [shape: f32[2,512], index: 0, kind: input, shape index: {}]
  %s1 = inlined_call_operand.vmem [shape: f32[1,256], index: 1, kind: input, shape index: {}]
  %s2 = inlined_call_operand.hbm [shape: f32[4,512], index: 2, kind: input, shape index: {}]
  %s3 = inlined_call_operand.hbm [shape: f32[4,512], index: 3, kind: input, shape index: {}]
  %s4 = inlined_call_operand.hbm [shape: f32[3], index: 4, kind: output, shape index: {}]
  %s5 = sld [smem:[#allocation0]]
  $region70: #{tpu_custom_call.1} parent=0
    _
  %s7 = ssub.s32 1, %s5
  %s8 = scalar_select 0, %s7, %s5
  $region1: #{tpu_custom_call.1} parent=0
    #allocation5 [shape = 'u8[16384]{0}', space=vmem, size = 0x4000, scoped, tag = 'input window, operand 0, single buffered']
    #allocation6 [shape = 's32[1]{0}', space=sflag, size = 0x4, scoped, tag = 'scoped memory for tpu_custom_call.1']
    #allocation7 [shape = 's32[1]{0}', space=sflag, size = 0x4, scoped, tag = 'scoped memory for tpu_custom_call.1']
    #allocation8 [shape = 'u8[16384]{0}', space=vmem, size = 0x4000, scoped, tag = 'input window, operand 2, single buffered']
    #allocation9 [shape = 's32[1]{0}', space=sflag, size = 0x4, scoped, tag = 'scoped memory for tpu_custom_call.1']
    #allocation10 [shape = 'u8[16384]{0}', space=vmem, size = 0x4000, scoped, tag = 'input window, operand 3, single buffered']
    #allocation11 [shape = 'u8[512]{0}', space=smem, size = 0x200, scoped, tag = 'output window, operand 0, single buffered']
    %9 = vsyncpa [#allocation6], 0
    %10 = vsyncpa [#allocation9], 0
    %11 = vsyncpa [#allocation7], 0
    // Predicated region
    $region2: #{tpu_custom_call.1} parent=1 // pred_check
      _
    $region3: #{tpu_custom_call.1} parent=1 // pred_check_branch
      %13 = sbr.rel (0) target = $region5
    $region4: #{tpu_custom_call.1} parent=1 // pred_region
      %s15 = ssub.s32 512, 128
      %16 = vsyncadd [#allocation6], %s15
      %s17 = sshll.u32 [#allocation5], 4
      %s18 = int_to_ptr.vmem [resolvable:$true] %s17
      %23 = dma.hbm_to_vmem [thread:$0]  %s0, 128, %s18, [#allocation6], 128, 128, 8
    $region5: #{tpu_custom_call.1} parent=1 // pred_fallthru
      _
    // Predicated region
    $region6: #{tpu_custom_call.1} parent=1 // pred_check
      _
    $region7: #{tpu_custom_call.1} parent=1 // pred_check_branch
      %25 = sbr.rel (0) target = $region9
    $region8: #{tpu_custom_call.1} parent=1 // pred_region
      _
    $region9: #{tpu_custom_call.1} parent=1 // pred_fallthru
      _
    // Predicated region
    $region10: #{tpu_custom_call.1} parent=1 // pred_check
      _
    $region11: #{tpu_custom_call.1} parent=1 // pred_check_branch
      %27 = sbr.rel (0) target = $region13
    $region12: #{tpu_custom_call.1} parent=1 // pred_region
      %s29 = ssub.s32 512, 256
      %30 = vsyncadd [#allocation9], %s29
      %s31 = sshll.u32 [#allocation8], 4
      %s32 = int_to_ptr.vmem [resolvable:$true] %s31
      %37 = dma.hbm_to_vmem [thread:$0]  %s2, 256, %s32, [#allocation9], 256, 256, 16
    $region13: #{tpu_custom_call.1} parent=1 // pred_fallthru
      _
    // Predicated region
    $region14: #{tpu_custom_call.1} parent=1 // pred_check
      _
    $region15: #{tpu_custom_call.1} parent=1 // pred_check_branch
      %39 = sbr.rel (0) target = $region17
    $region16: #{tpu_custom_call.1} parent=1 // pred_region
      %s41 = ssub.s32 512, 256
      %42 = vsyncadd [#allocation9], %s41
      %s43 = sshll.u32 [#allocation10], 4
      %s44 = int_to_ptr.vmem [resolvable:$true] %s43
      %49 = dma.hbm_to_vmem [thread:$0]  %s3, 256, %s44, [#allocation9], 256, 256, 16
    $region17: #{tpu_custom_call.1} parent=1 // pred_fallthru
      _
    // Predicated region
    $region18: #{tpu_custom_call.1} parent=1 // pred_check
      _
    $region19: #{tpu_custom_call.1} parent=1 // pred_check_branch
      %51 = sbr.rel (0) target = $region21
    $region20: #{tpu_custom_call.1} parent=1 // pred_region
      %52 = dma.done [#allocation6], 512
    $region21: #{tpu_custom_call.1} parent=1 // pred_fallthru
      _
    // Predicated region
    $region22: #{tpu_custom_call.1} parent=1 // pred_check
      _
    $region23: #{tpu_custom_call.1} parent=1 // pred_check_branch
      %54 = sbr.rel (0) target = $region25
    $region24: #{tpu_custom_call.1} parent=1 // pred_region
      %55 = dma.done [#allocation9], 512
    $region25: #{tpu_custom_call.1} parent=1 // pred_fallthru
      _
    // Predicated region
    $region26: #{tpu_custom_call.1} parent=1 // pred_check
      _
    $region27: #{tpu_custom_call.1} parent=1 // pred_check_branch
      %57 = sbr.rel (0) target = $region29
    $region28: #{tpu_custom_call.1} parent=1 // pred_region
      %58 = dma.done [#allocation9], 512
    $region29: #{tpu_custom_call.1} parent=1 // pred_fallthru
      _
    %p59 = scmp.eq.s32.totalorder 0, 0
    // Predicated region
    $region30: #{tpu_custom_call.1} parent=1 // pred_check
      %p60 = pneg %p59
    $region31: #{tpu_custom_call.1} parent=1 // pred_check_branch
      %62 = sbr.rel (%p60) target = $region33
    $region32: #{tpu_custom_call.1} parent=1 // pred_region
      %63 = vst [vmem:[#allocation2] sm:$0xff] 0.0
      %64 = vst [vmem:[#allocation2 + $0x8] sm:$0xff] 0.0
      %65 = vst [vmem:[#allocation2 + $0x10] sm:$0xff] 0.0
      %66 = vst [vmem:[#allocation2 + $0x18] sm:$0xff] 0.0
      %67 = vst [vmem:[#allocation3] sm:$0xff] 0.0
      %68 = vst [vmem:[#allocation3 + $0x8] sm:$0xff] 0.0
      %69 = vst [vmem:[#allocation4] sm:$0xff] 0.0
      %70 = vst [vmem:[#allocation4 + $0x8] sm:$0xff] 0.0
      %71 = vst [vmem:[#allocation4 + $0x10] sm:$0xff] 0.0
      %72 = vst [vmem:[#allocation4 + $0x18] sm:$0xff] 0.0
    $region33: #{tpu_custom_call.1} parent=1 // pred_fallthru
      _
    %s73 = smul.u32 0, 8
    %s74 = sadd.s32 %s73, 8
    %p75 = scmp.le.s32.totalorder %s74, 2
    // Predicated region
    $region34: #{tpu_custom_call.1} parent=1 // pred_check
      %p76 = pneg %p75
    $region35: #{tpu_custom_call.1} parent=1 // pred_check_branch
      %78 = sbr.rel (%p76) target = $region37
    $region36: #{tpu_custom_call.1} parent=1 // pred_region
      %v79 = vld [vmem:[#allocation5] sm:$0xff]
      %v80 = vld [vmem:[#allocation5 + $0x8] sm:$0xff]
      %v81 = vld [vmem:[#allocation5 + $0x10] sm:$0xff]
      %v82 = vld [vmem:[#allocation5 + $0x18] sm:$0xff]
      %v83 = vlog2.pop %v79
      %v84 = vmul.f32 %v83, 0.6931472
      %v85 = vlog2.pop %v80
      %v86 = vmul.f32 %v85, 0.6931472
      %v87 = vlog2.pop %v81
      %v88 = vmul.f32 %v87, 0.6931472
      %v89 = vlog2.pop %v82
      %v90 = vmul.f32 %v89, 0.6931472
      %v91 = vld [vmem:[#allocation2] sm:$0xff]
      %v92 = vld [vmem:[#allocation2 + $0x8] sm:$0xff]
      %v93 = vld [vmem:[#allocation2 + $0x10] sm:$0xff]
      %v94 = vld [vmem:[#allocation2 + $0x18] sm:$0xff]
      %v99 = vcombine.low %v84, %v86
      %v100 = vcombine.high %v84, %v86
      %v101 = vcombine.low %v88, %v90
      %v102 = vcombine.high %v88, %v90
      %v104 = vunpack.c.l.s4 1983009808
      %v105 = vunpack.c.0.s8 %v104
      %v106 = vlaneseq
      %v107 = vshrl.u32 %v106, 7
      %v108 = vsub.s32 %v105, %v107
      %v109 = vrot.slane %v99, %v108
      %v111 = vunpack.c.l.s4 1983009808
      %v112 = vunpack.c.0.s8 %v111
      %v113 = vlaneseq
      %v114 = vshrl.u32 %v113, 7
      %v115 = vsub.s32 %v112, %v114
      %v116 = vrot.slane %v100, %v115
      %v118 = vunpack.c.l.s4 1983009808
      %v119 = vunpack.c.0.s8 %v118
      %v120 = vlaneseq
      %v121 = vshrl.u32 %v120, 7
      %v122 = vsub.s32 %v119, %v121
      %v123 = vrot.slane %v101, %v122
      %v125 = vunpack.c.l.s4 1983009808
      %v126 = vunpack.c.0.s8 %v125
      %v127 = vlaneseq
      %v128 = vshrl.u32 %v127, 7
      %v129 = vsub.s32 %v126, %v128
      %v130 = vrot.slane %v102, %v129
      %v131 = vcombine.low %v109, %v123
      %v132 = vcombine.high %v109, %v123
      %v133 = vcombine.low %v116, %v130
      %v134 = vcombine.high %v116, %v130
      %v139 = vadd.f32 %v91, %v131
      %v140 = vadd.f32 %v92, %v132
      %v141 = vadd.f32 %v93, %v133
      %v142 = vadd.f32 %v94, %v134
      %143 = vst [vmem:[#allocation2] sm:$0xff] %v139
      %144 = vst [vmem:[#allocation2 + $0x8] sm:$0xff] %v140
      %145 = vst [vmem:[#allocation2 + $0x10] sm:$0xff] %v141
      %146 = vst [vmem:[#allocation2 + $0x18] sm:$0xff] %v142
    $region37: #{tpu_custom_call.1} parent=1 // pred_fallthru
      _
    %p147 = scmp.gt.s32.totalorder %s74, 2
    // Predicated region
    $region38: #{tpu_custom_call.1} parent=1 // pred_check
      %p148 = pneg %p147
    $region39: #{tpu_custom_call.1} parent=1 // pred_check_branch
      %150 = sbr.rel (%p148) target = $region41
    $region40: #{tpu_custom_call.1} parent=1 // pred_region
      %v151 = vlaneseq
      %v152 = vshrl.u32 %v151, 7
      %v153 = vstv %s73
      %v154 = vadd.s32 %v152, %v153
      %vm155 = vcmp.lt.s32.totalorder %v154, 2
      %v156 = vld [vmem:[#allocation5] sm:$0xff]
      %v157 = vld [vmem:[#allocation5 + $0x8] sm:$0xff]
      %v158 = vld [vmem:[#allocation5 + $0x10] sm:$0xff]
      %v159 = vld [vmem:[#allocation5 + $0x18] sm:$0xff]
      %v164 = vcombine.low %v156, %v157
      %v165 = vcombine.high %v156, %v157
      %v166 = vcombine.low %v158, %v159
      %v167 = vcombine.high %v158, %v159
      %v169 = vunpack.c.l.s4 1983009808
      %v170 = vunpack.c.0.s8 %v169
      %v171 = vlaneseq
      %v172 = vshrl.u32 %v171, 7
      %v173 = vsub.s32 %v170, %v172
      %v174 = vrot.slane %v164, %v173
      %v176 = vunpack.c.l.s4 1983009808
      %v177 = vunpack.c.0.s8 %v176
      %v178 = vlaneseq
      %v179 = vshrl.u32 %v178, 7
      %v180 = vsub.s32 %v177, %v179
      %v181 = vrot.slane %v165, %v180
      %v183 = vunpack.c.l.s4 1983009808
      %v184 = vunpack.c.0.s8 %v183
      %v185 = vlaneseq
      %v186 = vshrl.u32 %v185, 7
      %v187 = vsub.s32 %v184, %v186
      %v188 = vrot.slane %v166, %v187
      %v190 = vunpack.c.l.s4 1983009808
      %v191 = vunpack.c.0.s8 %v190
      %v192 = vlaneseq
      %v193 = vshrl.u32 %v192, 7
      %v194 = vsub.s32 %v191, %v193
      %v195 = vrot.slane %v167, %v194
      %v196 = vcombine.low %v174, %v188
      %v197 = vcombine.high %v174, %v188
      %v198 = vcombine.low %v181, %v195
      %v199 = vcombine.high %v181, %v195
      %v204 = vsel %vm155, %v196, 1.0
      %v205 = vsel %vm155, %v197, 1.0
      %v206 = vsel %vm155, %v198, 1.0
      %v207 = vsel %vm155, %v199, 1.0
      %v208 = vlog2.pop %v204
      %v209 = vmul.f32 %v208, 0.6931472
      %v210 = vlog2.pop %v205
      %v211 = vmul.f32 %v210, 0.6931472
      %v212 = vlog2.pop %v206
      %v213 = vmul.f32 %v212, 0.6931472
      %v214 = vlog2.pop %v207
      %v215 = vmul.f32 %v214, 0.6931472
      %v216 = vld [vmem:[#allocation2] sm:$0xff]
      %v217 = vld [vmem:[#allocation2 + $0x8] sm:$0xff]
      %v218 = vld [vmem:[#allocation2 + $0x10] sm:$0xff]
      %v219 = vld [vmem:[#allocation2 + $0x18] sm:$0xff]
      %v220 = vadd.f32 %v216, %v209
      %v221 = vadd.f32 %v217, %v211
      %v222 = vadd.f32 %v218, %v213
      %v223 = vadd.f32 %v219, %v215
      %224 = vst [vmem:[#allocation2] sm:$0xff] %v220
      %225 = vst [vmem:[#allocation2 + $0x8] sm:$0xff] %v221
      %226 = vst [vmem:[#allocation2 + $0x10] sm:$0xff] %v222
      %227 = vst [vmem:[#allocation2 + $0x18] sm:$0xff] %v223
    $region41: #{tpu_custom_call.1} parent=1 // pred_fallthru
      _
    %p228 = scmp.le.s32.totalorder %s74, 1
    // Predicated region
    $region42: #{tpu_custom_call.1} parent=1 // pred_check
      %p229 = pneg %p228
    $region43: #{tpu_custom_call.1} parent=1 // pred_check_branch
      %231 = sbr.rel (%p229) target = $region45
    $region44: #{tpu_custom_call.1} parent=1 // pred_region
      %v232 = vld [vmem:[%s1] sm:$0x3]
      %v233 = vld [vmem:[%s1 + $0x2] sm:$0x3]
      %v234 = vld [vmem:[%s1 + $0x4] sm:$0x3]
      %v235 = vld [vmem:[%s1 + $0x6] sm:$0x3]
      %v236 = vld [vmem:[%s1 + $0x8] sm:$0x3]
      %v237 = vld [vmem:[%s1 + $0xa] sm:$0x3]
      %v238 = vld [vmem:[%s1 + $0xc] sm:$0x3]
      %v239 = vld [vmem:[%s1 + $0xe] sm:$0x3]
      %v240 = vlog2.pop %v232
      %v241 = vmul.f32 %v240, 0.6931472
      %v242 = vlog2.pop %v233
      %v243 = vmul.f32 %v242, 0.6931472
      %v244 = vlog2.pop %v234
      %v245 = vmul.f32 %v244, 0.6931472
      %v246 = vlog2.pop %v235
      %v247 = vmul.f32 %v246, 0.6931472
      %v248 = vlog2.pop %v236
      %v249 = vmul.f32 %v248, 0.6931472
      %v250 = vlog2.pop %v237
      %v251 = vmul.f32 %v250, 0.6931472
      %v252 = vlog2.pop %v238
      %v253 = vmul.f32 %v252, 0.6931472
      %v254 = vlog2.pop %v239
      %v255 = vmul.f32 %v254, 0.6931472
      %v256 = vld [vmem:[#allocation3] sm:$0xff]
      %v257 = vld [vmem:[#allocation3 + $0x8] sm:$0xff]
      %v266 = vcombine.low %v241, %v243
      %v267 = vcombine.low %v245, %v247
      %v268 = vcombine.low %v249, %v251
      %v269 = vcombine.low %v253, %v255
      %v271 = vunpack.c.l.s4 1966171168
      %v272 = vunpack.c.0.s8 %v271
      %v273 = vlaneseq
      %v274 = vshrl.u32 %v273, 7
      %v275 = vsub.s32 %v272, %v274
      %v276 = vrot.slane %v266, %v275
      %v278 = vunpack.c.l.s4 1966171168
      %v279 = vunpack.c.0.s8 %v278
      %v280 = vlaneseq
      %v281 = vshrl.u32 %v280, 7
      %v282 = vsub.s32 %v279, %v281
      %v283 = vrot.slane %v267, %v282
      %v285 = vunpack.c.l.s4 1966171168
      %v286 = vunpack.c.0.s8 %v285
      %v287 = vlaneseq
      %v288 = vshrl.u32 %v287, 7
      %v289 = vsub.s32 %v286, %v288
      %v290 = vrot.slane %v268, %v289
      %v292 = vunpack.c.l.s4 1966171168
      %v293 = vunpack.c.0.s8 %v292
      %v294 = vlaneseq
      %v295 = vshrl.u32 %v294, 7
      %v296 = vsub.s32 %v293, %v295
      %v297 = vrot.slane %v269, %v296
      %v298 = vcombine.low %v276, %v283
      %v299 = vcombine.high %v276, %v283
      %v300 = vcombine.low %v290, %v297
      %v301 = vcombine.high %v290, %v297
      %v303 = vunpack.c.l.s4 1966171168
      %v304 = vunpack.c.0.s8 %v303
      %v305 = vlaneseq
      %v306 = vshrl.u32 %v305, 7
      %v307 = vsub.s32 %v304, %v306
      %v308 = vrot.slane %v298, %v307
      %v310 = vunpack.c.l.s4 1966171168
      %v311 = vunpack.c.0.s8 %v310
      %v312 = vlaneseq
      %v313 = vshrl.u32 %v312, 7
      %v314 = vsub.s32 %v311, %v313
      %v315 = vrot.slane %v299, %v314
      %v317 = vunpack.c.l.s4 1966171168
      %v318 = vunpack.c.0.s8 %v317
      %v319 = vlaneseq
      %v320 = vshrl.u32 %v319, 7
      %v321 = vsub.s32 %v318, %v320
      %v322 = vrot.slane %v300, %v321
      %v324 = vunpack.c.l.s4 1966171168
      %v325 = vunpack.c.0.s8 %v324
      %v326 = vlaneseq
      %v327 = vshrl.u32 %v326, 7
      %v328 = vsub.s32 %v325, %v327
      %v329 = vrot.slane %v301, %v328
      %v330 = vcombine.low %v308, %v322
      %v331 = vcombine.low %v315, %v329
      %v334 = vadd.f32 %v256, %v330
      %v335 = vadd.f32 %v257, %v331
      %336 = vst [vmem:[#allocation3] sm:$0xff] %v334
      %337 = vst [vmem:[#allocation3 + $0x8] sm:$0xff] %v335
    $region45: #{tpu_custom_call.1} parent=1 // pred_fallthru
      _
    %p338 = scmp.gt.s32.totalorder %s74, 1
    // Predicated region
    $region46: #{tpu_custom_call.1} parent=1 // pred_check
      %p339 = pneg %p338
    $region47: #{tpu_custom_call.1} parent=1 // pred_check_branch
      %341 = sbr.rel (%p339) target = $region49
    $region48: #{tpu_custom_call.1} parent=1 // pred_region
      %v342 = vlaneseq
      %v343 = vshrl.u32 %v342, 7
      %v344 = vstv %s73
      %v345 = vadd.s32 %v343, %v344
      %vm346 = vcmp.lt.s32.totalorder %v345, 1
      %v347 = vld [vmem:[%s1] sm:$0x3]
      %v348 = vld [vmem:[%s1 + $0x2] sm:$0x3]
      %v349 = vld [vmem:[%s1 + $0x4] sm:$0x3]
      %v350 = vld [vmem:[%s1 + $0x6] sm:$0x3]
      %v351 = vld [vmem:[%s1 + $0x8] sm:$0x3]
      %v352 = vld [vmem:[%s1 + $0xa] sm:$0x3]
      %v353 = vld [vmem:[%s1 + $0xc] sm:$0x3]
      %v354 = vld [vmem:[%s1 + $0xe] sm:$0x3]
      %v363 = vcombine.low %v347, %v348
      %v364 = vcombine.low %v349, %v350
      %v365 = vcombine.low %v351, %v352
      %v366 = vcombine.low %v353, %v354
      %v368 = vunpack.c.l.s4 1966171168
      %v369 = vunpack.c.0.s8 %v368
      %v370 = vlaneseq
      %v371 = vshrl.u32 %v370, 7
      %v372 = vsub.s32 %v369, %v371
      %v373 = vrot.slane %v363, %v372
      %v375 = vunpack.c.l.s4 1966171168
      %v376 = vunpack.c.0.s8 %v375
      %v377 = vlaneseq
      %v378 = vshrl.u32 %v377, 7
      %v379 = vsub.s32 %v376, %v378
      %v380 = vrot.slane %v364, %v379
      %v382 = vunpack.c.l.s4 1966171168
      %v383 = vunpack.c.0.s8 %v382
      %v384 = vlaneseq
      %v385 = vshrl.u32 %v384, 7
      %v386 = vsub.s32 %v383, %v385
      %v387 = vrot.slane %v365, %v386
      %v389 = vunpack.c.l.s4 1966171168
      %v390 = vunpack.c.0.s8 %v389
      %v391 = vlaneseq
      %v392 = vshrl.u32 %v391, 7
      %v393 = vsub.s32 %v390, %v392
      %v394 = vrot.slane %v366, %v393
      %v395 = vcombine.low %v373, %v380
      %v396 = vcombine.high %v373, %v380
      %v397 = vcombine.low %v387, %v394
      %v398 = vcombine.high %v387, %v394
      %v400 = vunpack.c.l.s4 1966171168
      %v401 = vunpack.c.0.s8 %v400
      %v402 = vlaneseq
      %v403 = vshrl.u32 %v402, 7
      %v404 = vsub.s32 %v401, %v403
      %v405 = vrot.slane %v395, %v404
      %v407 = vunpack.c.l.s4 1966171168
      %v408 = vunpack.c.0.s8 %v407
      %v409 = vlaneseq
      %v410 = vshrl.u32 %v409, 7
      %v411 = vsub.s32 %v408, %v410
      %v412 = vrot.slane %v396, %v411
      %v414 = vunpack.c.l.s4 1966171168
      %v415 = vunpack.c.0.s8 %v414
      %v416 = vlaneseq
      %v417 = vshrl.u32 %v416, 7
      %v418 = vsub.s32 %v415, %v417
      %v419 = vrot.slane %v397, %v418
      %v421 = vunpack.c.l.s4 1966171168
      %v422 = vunpack.c.0.s8 %v421
      %v423 = vlaneseq
      %v424 = vshrl.u32 %v423, 7
      %v425 = vsub.s32 %v422, %v424
      %v426 = vrot.slane %v398, %v425
      %v427 = vcombine.low %v405, %v419
      %v428 = vcombine.low %v412, %v426
      %v431 = vsel %vm346, %v427, 1.0
      %v432 = vsel %vm346, %v428, 1.0
      %v433 = vlog2.pop %v431
      %v434 = vmul.f32 %v433, 0.6931472
      %v435 = vlog2.pop %v432
      %v436 = vmul.f32 %v435, 0.6931472
      %v437 = vld [vmem:[#allocation3] sm:$0xff]
      %v438 = vld [vmem:[#allocation3 + $0x8] sm:$0xff]
      %v439 = vadd.f32 %v437, %v434
      %v440 = vadd.f32 %v438, %v436
      %441 = vst [vmem:[#allocation3] sm:$0xff] %v439
      %442 = vst [vmem:[#allocation3 + $0x8] sm:$0xff] %v440
    $region49: #{tpu_custom_call.1} parent=1 // pred_fallthru
      _
    %p443 = scmp.le.s32.totalorder %s74, 4
    // Predicated region
    $region50: #{tpu_custom_call.1} parent=1 // pred_check
      %p444 = pneg %p443
    $region51: #{tpu_custom_call.1} parent=1 // pred_check_branch
      %446 = sbr.rel (%p444) target = $region53
    $region52: #{tpu_custom_call.1} parent=1 // pred_region
      %v447 = vld [vmem:[#allocation8] sm:$0xff]
      %v448 = vld [vmem:[#allocation8 + $0x8] sm:$0xff]
      %v449 = vld [vmem:[#allocation8 + $0x10] sm:$0xff]
      %v450 = vld [vmem:[#allocation8 + $0x18] sm:$0xff]
      %v451 = vld [vmem:[#allocation10] sm:$0xff]
      %v452 = vld [vmem:[#allocation10 + $0x8] sm:$0xff]
      %v453 = vld [vmem:[#allocation10 + $0x10] sm:$0xff]
      %v454 = vld [vmem:[#allocation10 + $0x18] sm:$0xff]
      %v455 = vsub.f32 %v447, %v451
      %v456 = vsub.f32 %v448, %v452
      %v457 = vsub.f32 %v449, %v453
      %v458 = vsub.f32 %v450, %v454
      %v459 = vmul.f32 %v455, %v455
      %v460 = vmul.f32 %v456, %v456
      %v461 = vmul.f32 %v457, %v457
      %v462 = vmul.f32 %v458, %v458
      %v463 = vld [vmem:[#allocation4] sm:$0xff]
      %v464 = vld [vmem:[#allocation4 + $0x8] sm:$0xff]
      %v465 = vld [vmem:[#allocation4 + $0x10] sm:$0xff]
      %v466 = vld [vmem:[#allocation4 + $0x18] sm:$0xff]
      %v471 = vcombine.low %v459, %v461
      %v472 = vcombine.high %v459, %v461
      %v473 = vcombine.low %v460, %v462
      %v474 = vcombine.high %v460, %v462
      %v479 = vadd.f32 %v463, %v471
      %v480 = vadd.f32 %v464, %v472
      %v481 = vadd.f32 %v465, %v473
      %v482 = vadd.f32 %v466, %v474
      %483 = vst [vmem:[#allocation4] sm:$0xff] %v479
      %484 = vst [vmem:[#allocation4 + $0x8] sm:$0xff] %v480
      %485 = vst [vmem:[#allocation4 + $0x10] sm:$0xff] %v481
      %486 = vst [vmem:[#allocation4 + $0x18] sm:$0xff] %v482
    $region53: #{tpu_custom_call.1} parent=1 // pred_fallthru
      _
    %p487 = scmp.gt.s32.totalorder %s74, 4
    // Predicated region
    $region54: #{tpu_custom_call.1} parent=1 // pred_check
      %p488 = pneg %p487
    $region55: #{tpu_custom_call.1} parent=1 // pred_check_branch
      %490 = sbr.rel (%p488) target = $region57
    $region56: #{tpu_custom_call.1} parent=1 // pred_region
      %v491 = vlaneseq
      %v492 = vshrl.u32 %v491, 7
      %v493 = vstv %s73
      %v494 = vadd.s32 %v492, %v493
      %vm495 = vcmp.lt.s32.totalorder %v494, 4
      %v496 = vld [vmem:[#allocation8] sm:$0xff]
      %v497 = vld [vmem:[#allocation8 + $0x8] sm:$0xff]
      %v498 = vld [vmem:[#allocation8 + $0x10] sm:$0xff]
      %v499 = vld [vmem:[#allocation8 + $0x18] sm:$0xff]
      %v500 = vld [vmem:[#allocation10] sm:$0xff]
      %v501 = vld [vmem:[#allocation10 + $0x8] sm:$0xff]
      %v502 = vld [vmem:[#allocation10 + $0x10] sm:$0xff]
      %v503 = vld [vmem:[#allocation10 + $0x18] sm:$0xff]
      %v504 = vsub.f32 %v496, %v500
      %v505 = vsub.f32 %v497, %v501
      %v506 = vsub.f32 %v498, %v502
      %v507 = vsub.f32 %v499, %v503
      %v508 = vmul.f32 %v504, %v504
      %v509 = vmul.f32 %v505, %v505
      %v510 = vmul.f32 %v506, %v506
      %v511 = vmul.f32 %v507, %v507
      %v516 = vcombine.low %v508, %v510
      %v517 = vcombine.high %v508, %v510
      %v518 = vcombine.low %v509, %v511
      %v519 = vcombine.high %v509, %v511
      %v524 = vsel %vm495, %v516, 0.0
      %v525 = vsel %vm495, %v517, 0.0
      %v526 = vsel %vm495, %v518, 0.0
      %v527 = vsel %vm495, %v519, 0.0
      %v528 = vld [vmem:[#allocation4] sm:$0xff]
      %v529 = vld [vmem:[#allocation4 + $0x8] sm:$0xff]
      %v530 = vld [vmem:[#allocation4 + $0x10] sm:$0xff]
      %v531 = vld [vmem:[#allocation4 + $0x18] sm:$0xff]
      %v532 = vadd.f32 %v528, %v524
      %v533 = vadd.f32 %v529, %v525
      %v534 = vadd.f32 %v530, %v526
      %v535 = vadd.f32 %v531, %v527
      %536 = vst [vmem:[#allocation4] sm:$0xff] %v532
      %537 = vst [vmem:[#allocation4 + $0x8] sm:$0xff] %v533
      %538 = vst [vmem:[#allocation4 + $0x10] sm:$0xff] %v534
      %539 = vst [vmem:[#allocation4 + $0x18] sm:$0xff] %v535
    $region57: #{tpu_custom_call.1} parent=1 // pred_fallthru
      _
    // Predicated region
    $region58: #{tpu_custom_call.1} parent=1 // pred_check
      %p540 = pneg %p59
    $region59: #{tpu_custom_call.1} parent=1 // pred_check_branch
      %542 = sbr.rel (%p540) target = $region61
    $region60: #{tpu_custom_call.1} parent=1 // pred_region
      %v543 = vld [vmem:[#allocation2] sm:$0xff]
      %v544 = vld [vmem:[#allocation2 + $0x8] sm:$0xff]
      %v545 = vld [vmem:[#allocation2 + $0x10] sm:$0xff]
      %v546 = vld [vmem:[#allocation2 + $0x18] sm:$0xff]
      %v547 = vadd.f32 %v543, %v544
      %v548 = vadd.f32 %v547, %v545
      %v549 = vadd.f32 %v548, %v546
      %550 = vadd.xlane.f32.xlu0 %v549
      %v551 = vpop.xlane.xlu0 %550
      %v552 = vrot.slane %v551, 4
      %v553 = vadd.f32 %v551, %v552
      %v554 = vrot.slane %v553, 2
      %v555 = vadd.f32 %v553, %v554
      %v556 = vrot.slane %v555, 1
      %v557 = vadd.f32 %v555, %v556
      %s558 = vtos %v557
      %s559 = scalar_lea.smem [#allocation11], 0
      %560 = sst [smem:[%s559]] %s558
      %v561 = vld [vmem:[#allocation3] sm:$0xff]
      %v562 = vld [vmem:[#allocation3 + $0x8] sm:$0xff]
      %v563 = vadd.f32 %v561, %v562
      %564 = vadd.xlane.f32.xlu0 %v563
      %v565 = vpop.xlane.xlu0 %564
      %v566 = vrot.slane %v565, 4
      %v567 = vadd.f32 %v565, %v566
      %v568 = vrot.slane %v567, 2
      %v569 = vadd.f32 %v567, %v568
      %v570 = vrot.slane %v569, 1
      %v571 = vadd.f32 %v569, %v570
      %s572 = vtos %v571
      %s573 = scalar_lea.smem [#allocation11], 1
      %574 = sst [smem:[%s573]] %s572
      %v575 = vld [vmem:[#allocation4] sm:$0xff]
      %v576 = vld [vmem:[#allocation4 + $0x8] sm:$0xff]
      %v577 = vld [vmem:[#allocation4 + $0x10] sm:$0xff]
      %v578 = vld [vmem:[#allocation4 + $0x18] sm:$0xff]
      %v579 = vadd.f32 %v575, %v576
      %v580 = vadd.f32 %v579, %v577
      %v581 = vadd.f32 %v580, %v578
      %582 = vadd.xlane.f32.xlu0 %v581
      %v583 = vpop.xlane.xlu0 %582
      %v584 = vrot.slane %v583, 4
      %v585 = vadd.f32 %v583, %v584
      %v586 = vrot.slane %v585, 2
      %v587 = vadd.f32 %v585, %v586
      %v588 = vrot.slane %v587, 1
      %v589 = vadd.f32 %v587, %v588
      %s590 = vtos %v589
      %s591 = scalar_lea.smem [#allocation11], 2
      %592 = sst [smem:[%s591]] %s590
    $region61: #{tpu_custom_call.1} parent=1 // pred_fallthru
      _
    // Predicated region
    $region62: #{tpu_custom_call.1} parent=1 // pred_check
      _
    $region63: #{tpu_custom_call.1} parent=1 // pred_check_branch
      %594 = sbr.rel (0) target = $region65
    $region64: #{tpu_custom_call.1} parent=1 // pred_region
      %s596 = ssub.s32 16, 16
      %597 = vsyncadd [#allocation7], %s596
      %600 = dma.smem_to_hbm [#allocation11], 16, %s4, [#allocation7]
    $region65: #{tpu_custom_call.1} parent=1 // pred_fallthru
      _
    // Predicated region
    $region66: #{tpu_custom_call.1} parent=1 // pred_check
      _
    $region67: #{tpu_custom_call.1} parent=1 // pred_check_branch
      %602 = sbr.rel (0) target = $region69
    $region68: #{tpu_custom_call.1} parent=1 // pred_region
      %603 = dma.done [#allocation7], 16
    $region69: #{tpu_custom_call.1} parent=1 // pred_fallthru
      _
    %604 = sfence
    %605 = vsyncpa [#allocation6], 1
    %606 = vsyncpa [#allocation9], 1
    %607 = vsyncpa [#allocation7], 1

</llo_original>
